<compile_context>
chip_gen: v6e
topology: v6e:2x2x1
jax: 0.10.0
libtpu: 0.0.40
codegen_flags: <defaults>
</compile_context>

<pallas_src>
import jax
import jax.numpy as jnp
from jax.experimental import pallas as pl
from jax.experimental.pallas import tpu as pltpu

N_LAYERS = 4
BATCH = 1000          # small demo size (exercises padding / slicing paths)
LANES = 128           # TPU vreg lane width
MAX_TILE_ROWS = 512   # rows per grid step (~256 KiB f32 per buffer)


def folded_affine_kernel(w_ref, b_ref, x_ref, o_ref):
    """Chain of Linear(1,1) layers folded into one affine transform.

    w_ref, b_ref: (n,) f32 scalar-prefetch args in SMEM.
    x_ref, o_ref: (TILE_R, 128) f32 tiles in VMEM.

    The recurrence x <- w[i]*x + b[i] is folded with a statically unrolled
    scalar loop (essentially free), leaving a single VPU FMA over the
    lane-dense tile -> the kernel is a pure copy+fma at the HBM roofline.
    """
    n = w_ref.shape[0]
    w_eff = w_ref[0]
    b_eff = b_ref[0]
    for i in range(1, n):              # static unroll over layers
        w_eff = w_eff * w_ref[i]
        b_eff = b_eff * w_ref[i] + b_ref[i]
    o_ref[...] = x_ref[...] * w_eff + b_eff


def lin_reg_regressor(x, weights, biases, *, max_tile_rows=MAX_TILE_ROWS):
    """x: (B, 1) f32; weights, biases: (n,) f32. Returns (B, 1) f32."""
    B = x.shape[0]

    # Lane-dense layout: flatten (B, 1) -> pad -> (rows_padded, 128) slab.
    rows = pl.cdiv(B, LANES)
    tile_r = max(8, min(max_tile_rows, ((rows + 7) // 8) * 8))  # multiple of 8
    rows_padded = ((rows + tile_r - 1) // tile_r) * tile_r
    padded = rows_padded * LANES

    x_flat = jnp.reshape(x, (-1,))
    x_slab = jnp.pad(x_flat, (0, padded - B)).reshape(rows_padded, LANES)

    grid = (rows_padded // tile_r,)
    out_slab = pl.pallas_call(
        folded_affine_kernel,
        out_shape=jax.ShapeDtypeStruct((rows_padded, LANES), jnp.float32),
        grid_spec=pltpu.PrefetchScalarGridSpec(
            num_scalar_prefetch=2,  # weights, biases -> SMEM
            grid=grid,
            in_specs=[pl.BlockSpec((tile_r, LANES), lambda i, w, b: (i, 0))],
            out_specs=pl.BlockSpec((tile_r, LANES), lambda i, w, b: (i, 0)),
        ),
        compiler_params=pltpu.CompilerParams(
            # Batch tiles are independent: shard them across v7x's 2 TCs.
            dimension_semantics=("parallel",),
        ),
    )(weights, biases, x_slab)

    # Strip the lane padding and restore the (B, 1) PyTorch layout.
    return out_slab.reshape(-1)[:B].reshape(B, 1)


def init_params(key, n):
    # nn.Linear(1, 1) default init: U(-1/sqrt(fan_in), 1/sqrt(fan_in)) with
    # fan_in = 1 -> U(-1, 1) for both weight and bias.
    kw, kb = jax.random.split(key)
    weights = jax.random.uniform(kw, (n,), jnp.float32, minval=-1.0, maxval=1.0)
    biases = jax.random.uniform(kb, (n,), jnp.float32, minval=-1.0, maxval=1.0)
    return weights, biases


def reference_forward(x, weights, biases):
    # Plain-JAX reference of the sequential Linear(1,1) chain.
    for i in range(weights.shape[0]):
        x = x * weights[i] + biases[i]
    return x


if __name__ == "__main__":
    key = jax.random.PRNGKey(0)
    k_params, k_x = jax.random.split(key)

    weights, biases = init_params(k_params, N_LAYERS)
    x = jax.random.normal(k_x, (BATCH, 1), jnp.float32)

    out = jax.block_until_ready(lin_reg_regressor(x, weights, biases))

    ref = reference_forward(x, weights, biases)
    assert out.shape == (BATCH, 1)
    # Folded affine differs from the sequential chain only by rounding order.
    assert jnp.allclose(out, ref, atol=1e-5, rtol=1e-5), float(
        jnp.max(jnp.abs(out - ref))
    )

    print("KERNEL_OK")
</pallas_src>

<mosaic_0001>
module attributes {stable_mosaic.version = 11 : i64} {
  func.func @folded_affine_kernel(%arg0: i32, %arg1: memref<4xf32, #tpu.memory_space<smem>>, %arg2: memref<4xf32, #tpu.memory_space<smem>>, %arg3: memref<8x128xf32, #tpu.memory_space<vmem>>, %arg4: memref<8x128xf32, #tpu.memory_space<vmem>>) attributes {dimension_semantics = [#tpu.dimension_semantics<parallel>], iteration_bounds = array<i64: 1>, scalar_prefetch = 2 : i64, scratch_operands = 0 : i64, tpu.core_type = #tpu.core_type<tc>, window_params = [{transform_indices = @transform_0, window_bounds = array<i64: 8, 128>}, {transform_indices = @transform_1, window_bounds = array<i64: 8, 128>}]} {
    %c0 = arith.constant 0 : index
    %0 = memref.load %arg1[%c0] : memref<4xf32, #tpu.memory_space<smem>>
    %c0_0 = arith.constant 0 : index
    %1 = memref.load %arg2[%c0_0] : memref<4xf32, #tpu.memory_space<smem>>
    %c1 = arith.constant 1 : index
    %2 = memref.load %arg1[%c1] : memref<4xf32, #tpu.memory_space<smem>>
    %3 = arith.mulf %0, %2 : f32
    %c1_1 = arith.constant 1 : index
    %4 = memref.load %arg1[%c1_1] : memref<4xf32, #tpu.memory_space<smem>>
    %5 = arith.mulf %1, %4 : f32
    %c1_2 = arith.constant 1 : index
    %6 = memref.load %arg2[%c1_2] : memref<4xf32, #tpu.memory_space<smem>>
    %7 = arith.addf %5, %6 : f32
    %c2 = arith.constant 2 : index
    %8 = memref.load %arg1[%c2] : memref<4xf32, #tpu.memory_space<smem>>
    %9 = arith.mulf %3, %8 : f32
    %c2_3 = arith.constant 2 : index
    %10 = memref.load %arg1[%c2_3] : memref<4xf32, #tpu.memory_space<smem>>
    %11 = arith.mulf %7, %10 : f32
    %c2_4 = arith.constant 2 : index
    %12 = memref.load %arg2[%c2_4] : memref<4xf32, #tpu.memory_space<smem>>
    %13 = arith.addf %11, %12 : f32
    %c3 = arith.constant 3 : index
    %14 = memref.load %arg1[%c3] : memref<4xf32, #tpu.memory_space<smem>>
    %15 = arith.mulf %9, %14 : f32
    %c3_5 = arith.constant 3 : index
    %16 = memref.load %arg1[%c3_5] : memref<4xf32, #tpu.memory_space<smem>>
    %17 = arith.mulf %13, %16 : f32
    %c3_6 = arith.constant 3 : index
    %18 = memref.load %arg2[%c3_6] : memref<4xf32, #tpu.memory_space<smem>>
    %19 = arith.addf %17, %18 : f32
    %c0_7 = arith.constant 0 : index
    %c0_8 = arith.constant 0 : index
    %20 = vector.load %arg3[%c0_7, %c0_8] : memref<8x128xf32, #tpu.memory_space<vmem>>, vector<8x128xf32>
    %21 = vector.broadcast %15 : f32 to vector<8x128xf32>
    %22 = arith.mulf %20, %21 : vector<8x128xf32>
    %23 = vector.broadcast %19 : f32 to vector<8x128xf32>
    %24 = arith.addf %22, %23 : vector<8x128xf32>
    %c0_9 = arith.constant 0 : index
    %c0_10 = arith.constant 0 : index
    %25 = vector.load %arg4[%c0_9, %c0_10] : memref<8x128xf32, #tpu.memory_space<vmem>>, vector<8x128xf32>
    tpu.vector_store %arg4[%c0_9, %c0_10], %24 {strides = array<i32>} : memref<8x128xf32, #tpu.memory_space<vmem>>, vector<8x128xf32>,
    return
  }
  func.func @transform_0(%arg0: i32, %arg1: memref<4xf32, #tpu.memory_space<smem>>, %arg2: memref<4xf32, #tpu.memory_space<smem>>) -> (i32, i32) {
    %c0_i32 = arith.constant 0 : i32
    %c0_i32_0 = arith.constant 0 : i32
    return %arg0, %c0_i32 : i32, i32
  }
  func.func @transform_1(%arg0: i32, %arg1: memref<4xf32, #tpu.memory_space<smem>>, %arg2: memref<4xf32, #tpu.memory_space<smem>>) -> (i32, i32) {
    %c0_i32 = arith.constant 0 : i32
    %c0_i32_0 = arith.constant 0 : i32
    return %arg0, %c0_i32 : i32, i32
  }
}

</mosaic_0001>

<llo_original>
// kernel: tpu_custom_call.1
$region0: #{tpu_custom_call.1}
  #allocation0 [shape = 'u32[]', space=smem, size = 0x4, offset = 0x4, fixed_abs, tag = 'smem constant byte address 0x4 - core index']
  #allocation1 [shape = 'u32[144,128]{1,0:T(1,128)}', space=vmem, size = 0x12000, scoped, tag = 'internal scratch']
  #allocation2 [shape = 's32[1]{0}', space=sflag, size = 0x4, scoped, tag = 'scoped memory for tpu_custom_call.1']
  #allocation3 [shape = 'u8[512]{0}', space=smem, size = 0x200, scoped, tag = 'prefetched SMEM operand 0']
  #allocation4 [shape = 'u8[512]{0}', space=smem, size = 0x200, scoped, tag = 'prefetched SMEM operand 1']
  %s0 = inlined_call_operand.hbm [shape: f32[4], index: 0, kind: input, shape index: {}]
  %s1 = inlined_call_operand.vmem [shape: f32[4], index: 1, kind: input, shape index: {}]
  %s2 = inlined_call_operand.hbm [shape: f32[8,128], index: 2, kind: input, shape index: {}]
  %s3 = inlined_call_operand.hbm [shape: f32[8,128], index: 3, kind: output, shape index: {}]
  %s4 = sld [smem:[#allocation0]]
  $region18: #{tpu_custom_call.1} parent=0
    _
  %s6 = ssub.s32 1, %s4
  %s7 = scalar_select 0, %s6, %s4
  %9 = dma.hbm_to_smem %s0, 16, [#allocation3], [#allocation2]
  %s10 = sshll.u32 %s1, 4
  %s11 = int_to_ptr.vmem [resolvable:$true] %s10
  %13 = dma.vmem_to_smem %s11, 16, [#allocation4], [#allocation2]
  %14 = dma.done [#allocation2], 32
  %15 = sfence
  $region1: #{tpu_custom_call.1} parent=0
    #allocation5 [shape = 'u8[4096]{0}', space=vmem, size = 0x1000, scoped, tag = 'input window, operand 2, single buffered']
    #allocation6 [shape = 's32[1]{0}', space=sflag, size = 0x4, scoped, tag = 'scoped memory for tpu_custom_call.1']
    #allocation7 [shape = 's32[1]{0}', space=sflag, size = 0x4, scoped, tag = 'scoped memory for tpu_custom_call.1']
    #allocation8 [shape = 'u8[4096]{0}', space=vmem, size = 0x1000, scoped, tag = 'output window, operand 0, single buffered']
    %16 = vsyncpa [#allocation6], 0
    %17 = vsyncpa [#allocation7], 0
    // Predicated region
    $region2: #{tpu_custom_call.1} parent=1 // pred_check
      _
    $region3: #{tpu_custom_call.1} parent=1 // pred_check_branch
      %19 = sbr.rel (0) target = $region5
    $region4: #{tpu_custom_call.1} parent=1 // pred_region
      %s21 = ssub.s32 128, 128
      %22 = vsyncadd [#allocation6], %s21
      %s24 = sshll.u32 [#allocation5], 4
      %s25 = int_to_ptr.vmem [resolvable:$true] %s24
      %27 = dma.hbm_to_vmem [thread:$0]  %s2, 128, %s25, [#allocation6]
    $region5: #{tpu_custom_call.1} parent=1 // pred_fallthru
      _
    // Predicated region
    $region6: #{tpu_custom_call.1} parent=1 // pred_check
      _
    $region7: #{tpu_custom_call.1} parent=1 // pred_check_branch
      %29 = sbr.rel (0) target = $region9
    $region8: #{tpu_custom_call.1} parent=1 // pred_region
      %30 = dma.done [#allocation6], 128
    $region9: #{tpu_custom_call.1} parent=1 // pred_fallthru
      _
    %s31 = sld [smem:[#allocation3]]
    %s32 = sld [smem:[#allocation4]]
    %s33 = sld [smem:[#allocation3 + $0x1]]
    %s34 = smul.f32 %s31, %s33
    %s35 = smul.f32 %s32, %s33
    %s36 = sld [smem:[#allocation4 + $0x1]]
    %s37 = sadd.f32 %s35, %s36
    %s38 = sld [smem:[#allocation3 + $0x2]]
    %s39 = smul.f32 %s34, %s38
    %s40 = smul.f32 %s37, %s38
    %s41 = sld [smem:[#allocation4 + $0x2]]
    %s42 = sadd.f32 %s40, %s41
    %s43 = sld [smem:[#allocation3 + $0x3]]
    %s44 = smul.f32 %s39, %s43
    %s45 = smul.f32 %s42, %s43
    %s46 = sld [smem:[#allocation4 + $0x3]]
    %s47 = sadd.f32 %s45, %s46
    %v48 = vld [vmem:[#allocation5] sm:$0xff]
    %v49 = vstv %s44
    %v50 = vmul.f32 %v48, %v49
    %v51 = vstv %s47
    %v52 = vadd.f32 %v50, %v51
    %53 = vst [vmem:[#allocation8] sm:$0xff] %v52
    // Predicated region
    $region10: #{tpu_custom_call.1} parent=1 // pred_check
      _
    $region11: #{tpu_custom_call.1} parent=1 // pred_check_branch
      %55 = sbr.rel (0) target = $region13
    $region12: #{tpu_custom_call.1} parent=1 // pred_region
      %s57 = ssub.s32 128, 128
      %58 = vsyncadd [#allocation7], %s57
      %s60 = sshll.u32 [#allocation8], 4
      %s61 = int_to_ptr.vmem [resolvable:$true] %s60
      %63 = dma.vmem_to_hbm [thread:$0]  %s61, 128, %s3, [#allocation7]
    $region13: #{tpu_custom_call.1} parent=1 // pred_fallthru
      _
    // Predicated region
    $region14: #{tpu_custom_call.1} parent=1 // pred_check
      _
    $region15: #{tpu_custom_call.1} parent=1 // pred_check_branch
      %65 = sbr.rel (0) target = $region17
    $region16: #{tpu_custom_call.1} parent=1 // pred_region
      %66 = dma.done [#allocation7], 128
    $region17: #{tpu_custom_call.1} parent=1 // pred_fallthru
      _
    %67 = vsyncpa [#allocation6], 1
    %68 = vsyncpa [#allocation7], 1

</llo_original>
